<compile_context>
chip_gen: v7x
topology: tpu7x:2x2x1
jax: 0.10.0
libtpu: 0.0.40
codegen_flags: <defaults>
</compile_context>

<pallas_src>
import functools

import jax
import jax.numpy as jnp
from jax.experimental import pallas as pl
from jax.experimental.pallas import tpu as pltpu

_LANES = 128
_MAX_RAGGED_COLS = 2048


# --------------------------------------------------------------------------
# Kernel body (pure VPU elementwise; the op is HBM-bandwidth bound)
# --------------------------------------------------------------------------
def _h_swish_kernel(x_ref, o_ref):
    # Compute in f32 regardless of storage dtype (free: VPU slots have slack);
    # matches a float-compute PyTorch hardswish for bf16/f16 inputs.
    x = x_ref[...].astype(jnp.float32)
    hs = jnp.clip(x + 3.0, 0.0, 6.0) * (1.0 / 6.0)  # h_sigmoid
    o_ref[...] = (x * hs).astype(o_ref.dtype)


def _h_swish_jnp(x):
    xf = x.astype(jnp.float32)
    return (xf * (jnp.clip(xf + 3.0, 0.0, 6.0) * (1.0 / 6.0))).astype(x.dtype)


# --------------------------------------------------------------------------
# Generation / sizing helpers
# --------------------------------------------------------------------------
def _round_up(n, m):
    return ((n + m - 1) // m) * m


@functools.lru_cache(maxsize=1)
def _device_kind() -> str:
    try:
        return jax.devices()[0].device_kind.lower()
    except Exception:
        return ""


@functools.lru_cache(maxsize=1)
def _vmem_capacity_bytes() -> int:
    try:
        return int(pltpu.get_tpu_info().vmem_capacity_bytes)
    except Exception:
        return 64 * 1024 * 1024  # conservative (v7x physical VMEM per TC)


def _is_v7() -> bool:
    return "v7" in _device_kind()


def _target_block_bytes() -> int:
    # v7x: per-grid-step overhead (~0.35us) is proportionally larger at
    # 3.2 TB/s, so use ~6 MiB blocks (live = 4 x block ~= 24 MiB < 32 MiB
    # scoped default, < 64 MiB physical).  v5e/v6e: ~4 MiB blocks are already
    # >85% of the HBM roofline and keep live VMEM modest.
    return (6 if _is_v7() else 4) * 1024 * 1024


def _min_block_rows(dtype) -> int:
    itemsize = jnp.dtype(dtype).itemsize
    # Sublane packing: 8 rows (f32/i32), 16 (bf16/f16), 32 (int8/fp8).
    return 8 * max(1, 4 // max(1, itemsize))


def _pick_block_rows(rows: int, cols: int, dtype) -> int:
    itemsize = jnp.dtype(dtype).itemsize
    min_rows = _min_block_rows(dtype)
    if rows <= min_rows:
        return rows  # full-extent block is always legal
    bytes_per_row = _round_up(cols, _LANES) * itemsize  # VMEM (lane-padded)
    target_rows = max(
        min_rows,
        (_target_block_bytes() // bytes_per_row) // min_rows * min_rows,
    )
    if _is_v7():
        # Two TensorCores: make sure the CORE_PARALLEL grid has >= 2 blocks so
        # both TCs stream.  (Skip on single-TC chips: it only shrinks blocks.)
        half_rows = _round_up(pl.cdiv(rows, 2), min_rows)
        target_rows = min(target_rows, half_rows)
    return min(target_rows, rows)


# --------------------------------------------------------------------------
# pallas_call wrapper over a 2-D (rows, cols) row-major view
# --------------------------------------------------------------------------
def _h_swish_2d(x2d: jax.Array) -> jax.Array:
    rows, cols = x2d.shape
    itemsize = jnp.dtype(x2d.dtype).itemsize
    block_rows = _pick_block_rows(rows, cols, x2d.dtype)
    grid = (pl.cdiv(rows, block_rows),)

    # Scoped-VMEM budget: double-buffered input + output blocks + headroom.
    block_bytes = block_rows * _round_up(cols, _LANES) * itemsize
    vmem_limit = min(
        max(4 * block_bytes + 4 * 1024 * 1024, 16 * 1024 * 1024),
        max(_vmem_capacity_bytes() // 2, 32 * 1024 * 1024),
    )

    if _is_v7():
        # "parallel" is a near-no-op; CORE_PARALLEL actually shards the row
        # grid across v7x's two TensorCores (~2x for an HBM-bound op).
        dim_sem = (getattr(pltpu, "CORE_PARALLEL", "parallel"),)
    else:
        dim_sem = ("parallel",)

    n = rows * cols
    cost = pl.CostEstimate(
        flops=5 * n, transcendentals=0, bytes_accessed=2 * n * itemsize
    )

    return pl.pallas_call(
        _h_swish_kernel,
        out_shape=jax.ShapeDtypeStruct((rows, cols), x2d.dtype),
        grid_spec=pltpu.PrefetchScalarGridSpec(
            num_scalar_prefetch=0,
            grid=grid,
            in_specs=[pl.BlockSpec((block_rows, cols), lambda i: (i, 0))],
            out_specs=pl.BlockSpec((block_rows, cols), lambda i: (i, 0)),
        ),
        compiler_params=pltpu.CompilerParams(
            dimension_semantics=dim_sem,
            vmem_limit_bytes=vmem_limit,
        ),
        cost_estimate=cost,
    )(x2d)


def _ragged_2d_view(x: jax.Array) -> jax.Array:
    """Row-major collapse to 2-D (pure reshape, no copy) for total % 128 != 0.

    No trailing-dims product can be a multiple of 128 here, so pick the
    largest trailing product <= _MAX_RAGGED_COLS as the lane dimension: the
    HBM DMA stays contiguous (optimal traffic); only VMEM lane padding and
    VPU lane utilization are reduced, and those have slack for this op.
    """
    total = x.size
    cols = 1
    trailing = 1
    for d in reversed(x.shape):
        trailing *= d
        if trailing <= _MAX_RAGGED_COLS:
            cols = trailing
    if cols == 1:
        cols = x.shape[-1]  # last dim alone already exceeds the cap
    return x.reshape(total // cols, cols)


# --------------------------------------------------------------------------
# Public entry point: elementwise hard-swish matching the PyTorch h_swish.
# --------------------------------------------------------------------------
def h_swish(x: jax.Array) -> jax.Array:
    """Accepts any shape (e.g. NCHW); returns same shape & dtype."""
    orig_shape = x.shape
    total = x.size
    if total == 0:
        return x
    if total < _LANES:
        # Fewer than 128 elements: not worth a kernel launch.
        return _h_swish_jnp(x)

    if total % _LANES == 0:
        x2d = x.reshape(total // _LANES, _LANES)  # lane-dense fast path
    else:
        x2d = _ragged_2d_view(x)
        # Pathological guard: a minimum-height block must fit the budget
        # (only hit for a gigantic ragged last dim).
        itemsize = jnp.dtype(x.dtype).itemsize
        min_rows = min(_min_block_rows(x.dtype), x2d.shape[0])
        if _round_up(x2d.shape[1], _LANES) * itemsize * min_rows > _target_block_bytes():
            # TODO(synk): tile the column axis too instead of falling back.
            return _h_swish_jnp(x)

    return _h_swish_2d(x2d).reshape(orig_shape)


if __name__ == "__main__":
    key = jax.random.PRNGKey(0)

    # NCHW input like the PyTorch module receives.
    x = jax.random.normal(key, (2, 4, 16, 16), dtype=jnp.float32) * 4.0
    y = jax.block_until_ready(h_swish(x))
    assert y.shape == x.shape and y.dtype == x.dtype
    assert jnp.allclose(y, _h_swish_jnp(x), atol=1e-6, rtol=1e-6)

    # Ragged total (total % 128 != 0): single-pass kernel, no slice/concat.
    x2 = jax.random.normal(jax.random.PRNGKey(1), (5, 7, 31), dtype=jnp.float32) * 4.0
    y2 = jax.block_until_ready(h_swish(x2))
    assert y2.shape == x2.shape and y2.dtype == x2.dtype
    assert jnp.allclose(y2, _h_swish_jnp(x2), atol=1e-6, rtol=1e-6)

    # bf16 storage, f32 internal compute.
    x3 = jax.random.normal(jax.random.PRNGKey(2), (2, 8, 16, 16), dtype=jnp.bfloat16) * 4.0
    y3 = jax.block_until_ready(h_swish(x3))
    assert y3.shape == x3.shape and y3.dtype == x3.dtype
    assert jnp.allclose(
        y3.astype(jnp.float32), _h_swish_jnp(x3).astype(jnp.float32),
        atol=2e-2, rtol=2e-2,
    )

    print("KERNEL_OK")
</pallas_src>

<mosaic_0001>
module attributes {stable_mosaic.version = 11 : i64} {
  func.func @_h_swish_kernel(%arg0: i32, %arg1: memref<16x128xf32, #tpu.memory_space<vmem>>, %arg2: memref<16x128xf32, #tpu.memory_space<vmem>>) attributes {dimension_semantics = [#tpu.dimension_semantics<parallel>], iteration_bounds = array<i64: 1>, scalar_prefetch = 0 : i64, scratch_operands = 0 : i64, tpu.core_type = #tpu.core_type<tc>, window_params = [{transform_indices = @transform_0, window_bounds = array<i64: 16, 128>}, {transform_indices = @transform_1, window_bounds = array<i64: 16, 128>}]} {
    %c0 = arith.constant 0 : index
    %c0_0 = arith.constant 0 : index
    %0 = vector.load %arg1[%c0, %c0_0] : memref<16x128xf32, #tpu.memory_space<vmem>>, vector<16x128xf32>
    %cst = arith.constant 3.000000e+00 : f32
    %1 = vector.broadcast %cst : f32 to vector<16x128xf32>
    %2 = arith.addf %0, %1 : vector<16x128xf32>
    %cst_1 = arith.constant 0.000000e+00 : f32
    %cst_2 = arith.constant 6.000000e+00 : f32
    %3 = vector.broadcast %cst_1 : f32 to vector<16x128xf32>
    %4 = arith.maximumf %3, %2 : vector<16x128xf32>
    %5 = vector.broadcast %cst_2 : f32 to vector<16x128xf32>
    %6 = arith.minimumf %5, %4 : vector<16x128xf32>
    %cst_3 = arith.constant 0.166666672 : f32
    %7 = vector.broadcast %cst_3 : f32 to vector<16x128xf32>
    %8 = arith.mulf %6, %7 : vector<16x128xf32>
    %9 = arith.mulf %0, %8 : vector<16x128xf32>
    %c0_4 = arith.constant 0 : index
    %c0_5 = arith.constant 0 : index
    %10 = vector.load %arg2[%c0_4, %c0_5] : memref<16x128xf32, #tpu.memory_space<vmem>>, vector<16x128xf32>
    tpu.vector_store %arg2[%c0_4, %c0_5], %9 {strides = array<i32>} : memref<16x128xf32, #tpu.memory_space<vmem>>, vector<16x128xf32>,
    return
  }
  func.func @transform_0(%arg0: i32) -> (i32, i32) {
    %c0_i32 = arith.constant 0 : i32
    %c0_i32_0 = arith.constant 0 : i32
    return %arg0, %c0_i32 : i32, i32
  }
  func.func @transform_1(%arg0: i32) -> (i32, i32) {
    %c0_i32 = arith.constant 0 : i32
    %c0_i32_0 = arith.constant 0 : i32
    return %arg0, %c0_i32 : i32, i32
  }
}

</mosaic_0001>

<llo_original>
// kernel: tpu_custom_call.1
$region0: #{tpu_custom_call.1}
  #allocation0 [shape = 'u32[]', space=smem, size = 0x4, offset = 0x4, fixed_abs, tag = 'smem constant byte address 0x4 - core index']
  #allocation1 [shape = 'u32[144,128]{1,0:T(1,128)}', space=vmem, size = 0x12000, scoped, tag = 'internal scratch']
  %s0 = inlined_call_operand.hbm [shape: f32[16,128], index: 0, kind: input, shape index: {}]
  %s1 = inlined_call_operand.hbm [shape: f32[16,128], index: 1, kind: output, shape index: {}]
  %s2 = sld [smem:[#allocation0]]
  $region18: #{tpu_custom_call.1} parent=0
    _
  %s4 = ssub.s32 1, %s2
  %s5 = scalar_select 0, %s4, %s2
  $region1: #{tpu_custom_call.1} parent=0
    #allocation2 [shape = 'u8[8192]{0}', space=vmem, size = 0x2000, scoped, tag = 'input window, operand 0, single buffered']
    #allocation3 [shape = 's32[1]{0}', space=sflag, size = 0x4, scoped, tag = 'scoped memory for tpu_custom_call.1']
    #allocation4 [shape = 's32[1]{0}', space=sflag, size = 0x4, scoped, tag = 'scoped memory for tpu_custom_call.1']
    #allocation5 [shape = 'u8[8192]{0}', space=vmem, size = 0x2000, scoped, tag = 'output window, operand 0, single buffered']
    %6 = vsyncpa [#allocation3], 0
    %7 = vsyncpa [#allocation4], 0
    // Predicated region
    $region2: #{tpu_custom_call.1} parent=1 // pred_check
      _
    $region3: #{tpu_custom_call.1} parent=1 // pred_check_branch
      %9 = sbr.rel (0) target = $region5
    $region4: #{tpu_custom_call.1} parent=1 // pred_region
      %s11 = ssub.s32 256, 256
      %12 = vsyncadd [#allocation3], %s11
      %s13 = sshll.u32 [#allocation2], 4
      %s14 = int_to_ptr.vmem [resolvable:$true] %s13
      %19 = dma.hbm_to_vmem [thread:$0]  %s0, 256, %s14, [#allocation3], 128, 128, 8
    $region5: #{tpu_custom_call.1} parent=1 // pred_fallthru
      _
    // Predicated region
    $region6: #{tpu_custom_call.1} parent=1 // pred_check
      _
    $region7: #{tpu_custom_call.1} parent=1 // pred_check_branch
      %21 = sbr.rel (0) target = $region9
    $region8: #{tpu_custom_call.1} parent=1 // pred_region
      %22 = dma.done [#allocation3], 256
    $region9: #{tpu_custom_call.1} parent=1 // pred_fallthru
      _
    %v23 = vld [vmem:[#allocation2] sm:$0xff]
    %v24 = vld [vmem:[#allocation2 + $0x8] sm:$0xff]
    %v25 = vadd.f32 %v23, 3.0
    %v26 = vadd.f32 %v24, 3.0
    %v27 = vmax.f32 %v25, 0.0
    %v28 = vmax.f32 %v26, 0.0
    %v29 = vmin.f32 %v27, 6.0
    %v30 = vmin.f32 %v28, 6.0
    %v31 = vmul.f32 %v29, 0.16666667
    %v32 = vmul.f32 %v30, 0.16666667
    %v33 = vmul.f32 %v23, %v31
    %v34 = vmul.f32 %v24, %v32
    %35 = vst [vmem:[#allocation5] sm:$0xff] %v33
    %36 = vst [vmem:[#allocation5 + $0x8] sm:$0xff] %v34
    // Predicated region
    $region10: #{tpu_custom_call.1} parent=1 // pred_check
      _
    $region11: #{tpu_custom_call.1} parent=1 // pred_check_branch
      %38 = sbr.rel (0) target = $region13
    $region12: #{tpu_custom_call.1} parent=1 // pred_region
      %s40 = ssub.s32 256, 256
      %41 = vsyncadd [#allocation4], %s40
      %s42 = sshll.u32 [#allocation5], 4
      %s43 = int_to_ptr.vmem [resolvable:$true] %s42
      %48 = dma.vmem_to_hbm [thread:$0]  %s43, 256, %s1, [#allocation4], 128, 128, 8
    $region13: #{tpu_custom_call.1} parent=1 // pred_fallthru
      _
    // Predicated region
    $region14: #{tpu_custom_call.1} parent=1 // pred_check
      _
    $region15: #{tpu_custom_call.1} parent=1 // pred_check_branch
      %50 = sbr.rel (0) target = $region17
    $region16: #{tpu_custom_call.1} parent=1 // pred_region
      %51 = dma.done [#allocation4], 256
    $region17: #{tpu_custom_call.1} parent=1 // pred_fallthru
      _
    %52 = vsyncpa [#allocation3], 1
    %53 = vsyncpa [#allocation4], 1

</llo_original>
